<compile_context>
chip_gen: v6e
topology: v6e:2x2x1
jax: 0.10.0
libtpu: 0.0.40
codegen_flags: <defaults>
</compile_context>

<pallas_src>
import jax
import jax.numpy as jnp
from jax.experimental import pallas as pl
from jax.experimental.pallas import tpu as pltpu


def categorical_kernel(w_ref, b_ref, x_ref, out_ref):
    n_out = w_ref.shape[0]
    # raw[n_out, tb] = W[n_out, K] @ x[tb, K]^T + b  (contract on K, native x layout)
    raw = jax.lax.dot_general(
        w_ref[...], x_ref[...],
        dimension_numbers=(((1,), (1,)), ((), ())),
        preferred_element_type=jnp.float32) + b_ref[...]
    # Numerically stable log-softmax over the tiny n_out (sublane) axis.
    m = jnp.max(raw, axis=0, keepdims=True)
    z = raw - m
    e = jnp.exp(z)
    s = jnp.sum(e, axis=0, keepdims=True)
    logits = z - jnp.log(s)          # normalized logits (log-probs)
    probs = e / s                    # exact division (keeps 1e-5 tolerance)
    # Single sublane-dense (2*n_out, tb) = (8, tb) store.
    out_ref[...] = jnp.concatenate([logits, probs], axis=0)


def _round_up(v, m):
    return ((v + m - 1) // m) * m


def categorical_forward(x, w, b, *, block_b=8192):
    """Forward pass of the Categorical policy head.

    Args:
      x: [B, num_inputs] f32 activations (native layout, consumed as-is).
      w: [num_outputs, num_inputs] f32 weight (native PyTorch nn.Linear layout).
      b: [num_outputs] f32 bias.
      block_b: max batch tile width (multiple of 128).

    Returns:
      (logits, probs): both [B, num_outputs] f32, where `logits` are the
      normalized logits of torch.distributions.Categorical(logits=Linear(x)).
    """
    B, K = x.shape
    n_out, k2 = w.shape
    assert k2 == K
    assert block_b % 128 == 0, "block_b must be a multiple of 128"

    b_col = b.reshape(n_out, 1)      # broadcasts along lanes in-kernel

    if B <= 128:
        tb = B                       # tiny batch: single full-array block
    else:
        # >= 2 grid steps when possible (v7x has 2 TCs sharing the "parallel"
        # axis); tiles are multiples of 128 and capped at block_b.
        tb = min(block_b, _round_up(pl.cdiv(B, 2), 128))

    grid = (pl.cdiv(B, tb),)

    out = pl.pallas_call(
        categorical_kernel,
        out_shape=jax.ShapeDtypeStruct((2 * n_out, B), jnp.float32),
        grid_spec=pltpu.PrefetchScalarGridSpec(
            num_scalar_prefetch=0,
            grid=grid,
            in_specs=[
                # Constant block index -> weight/bias fetched once, stay resident.
                pl.BlockSpec((n_out, K), lambda i: (0, 0)),
                pl.BlockSpec((n_out, 1), lambda i: (0, 0)),
                # Native-layout, contiguous batch tile of x.
                pl.BlockSpec((tb, K), lambda i: (i, 0)),
            ],
            out_specs=pl.BlockSpec((2 * n_out, tb), lambda i: (0, i)),
        ),
        compiler_params=pltpu.CompilerParams(
            dimension_semantics=("parallel",)),
    )(w, b_col, x)

    logits = out[:n_out, :].T        # [B, n_out]
    probs = out[n_out:, :].T         # [B, n_out]
    return logits, probs


def _reference(x, w, b):
    raw = x @ w.T + b
    logits = raw - jax.scipy.special.logsumexp(raw, axis=-1, keepdims=True)
    probs = jax.nn.softmax(raw, axis=-1)
    return logits, probs


if __name__ == "__main__":
    # Module hyperparameters (pg_cartpole-style actor head, small synthetic sizes).
    num_inputs = 32
    num_outputs = 4

    key = jax.random.PRNGKey(0)
    k_x1, k_x2, k_w = jax.random.split(key, 3)

    # Deterministic parameter init matching the PyTorch __init__:
    #   weight ~ Normal(0, 0.1) with shape [num_outputs, num_inputs], bias = 0.1
    w = 0.1 * jax.random.normal(k_w, (num_outputs, num_inputs), dtype=jnp.float32)
    bias = jnp.full((num_outputs,), 0.1, dtype=jnp.float32)

    # Case 1: tiny batch (single grid step, full-array blocks).
    x_small = jax.random.normal(k_x1, (8, num_inputs), dtype=jnp.float32)
    logits, probs = categorical_forward(x_small, w, bias)
    jax.block_until_ready((logits, probs))
    logits_ref, probs_ref = _reference(x_small, w, bias)
    assert jnp.allclose(logits, logits_ref, atol=1e-5, rtol=1e-5)
    assert jnp.allclose(probs, probs_ref, atol=1e-5, rtol=1e-5)
    assert jnp.allclose(jnp.sum(probs, axis=-1), 1.0, atol=1e-5)

    # Case 2: batch > 128 -> tb = 256, grid = (2,), with a non-divisible
    # trailing block (300 % 256 = 44) exercising Pallas's bounded tail handling.
    x_big = jax.random.normal(k_x2, (300, num_inputs), dtype=jnp.float32)
    logits_b, probs_b = categorical_forward(x_big, w, bias)
    jax.block_until_ready((logits_b, probs_b))
    logits_b_ref, probs_b_ref = _reference(x_big, w, bias)
    assert jnp.allclose(logits_b, logits_b_ref, atol=1e-5, rtol=1e-5)
    assert jnp.allclose(probs_b, probs_b_ref, atol=1e-5, rtol=1e-5)
    assert jnp.allclose(jnp.sum(probs_b, axis=-1), 1.0, atol=1e-5)

    # TODO(synk): sampling / log_prob / entropy methods of FixedCategorical are
    # distribution utilities, not part of the forward hot path; they can be
    # computed from `logits` in plain JAX.
    print("KERNEL_OK")
</pallas_src>

<mosaic_0001>
module attributes {stable_mosaic.version = 11 : i64} {
  func.func @categorical_kernel(%arg0: i32, %arg1: memref<4x32xf32, #tpu.memory_space<vmem>>, %arg2: memref<4x1xf32, #tpu.memory_space<vmem>>, %arg3: memref<8x32xf32, #tpu.memory_space<vmem>>, %arg4: memref<8x8xf32, #tpu.memory_space<vmem>>) attributes {dimension_semantics = [#tpu.dimension_semantics<parallel>], iteration_bounds = array<i64: 1>, scalar_prefetch = 0 : i64, scratch_operands = 0 : i64, tpu.core_type = #tpu.core_type<tc>, window_params = [{pipeline_mode = #tpu.pipeline_mode<synchronous>, transform_indices = @transform_0, window_bounds = array<i64: 4, 32>}, {pipeline_mode = #tpu.pipeline_mode<synchronous>, transform_indices = @transform_1, window_bounds = array<i64: 4, 1>}, {transform_indices = @transform_2, window_bounds = array<i64: 8, 32>}, {transform_indices = @transform_3, window_bounds = array<i64: 8, 8>}]} {
    %c0 = arith.constant 0 : index
    %c0_0 = arith.constant 0 : index
    %0 = vector.load %arg1[%c0, %c0_0] : memref<4x32xf32, #tpu.memory_space<vmem>>, vector<4x32xf32>
    %c0_1 = arith.constant 0 : index
    %c0_2 = arith.constant 0 : index
    %1 = vector.load %arg3[%c0_1, %c0_2] : memref<8x32xf32, #tpu.memory_space<vmem>>, vector<8x32xf32>
    %cst = arith.constant dense<0.000000e+00> : vector<4x8xf32>
    %2 = tpu.matmul %0, %1, %cst {dimension_numbers = #tpu.dot_dimension_numbers<[1], [1], [0], [0], [0, 0, 1, 0], [], []>} : vector<4x32xf32>, vector<8x32xf32>, vector<4x8xf32> -> vector<4x8xf32>
    %c0_3 = arith.constant 0 : index
    %c0_4 = arith.constant 0 : index
    %3 = vector.load %arg2[%c0_3, %c0_4] : memref<4x1xf32, #tpu.memory_space<vmem>>, vector<4x1xf32>
    %4 = vector.broadcast %3 : vector<4x1xf32> to vector<4x8xf32>
    %5 = arith.addf %2, %4 : vector<4x8xf32>
    %cst_5 = arith.constant dense<0xFF800000> : vector<8xf32>
    %6 = vector.multi_reduction <maximumf>, %5, %cst_5 [0] : vector<4x8xf32> to vector<8xf32>
    %7 = vector.shape_cast %6 : vector<8xf32> to vector<1x8xf32>
    %8 = vector.broadcast %7 : vector<1x8xf32> to vector<4x8xf32>
    %9 = arith.subf %5, %8 : vector<4x8xf32>
    %10 = math.exp %9 : vector<4x8xf32>
    %cst_6 = arith.constant dense<0.000000e+00> : vector<8xf32>
    %11 = vector.multi_reduction <add>, %10, %cst_6 [0] : vector<4x8xf32> to vector<8xf32>
    %12 = vector.shape_cast %11 : vector<8xf32> to vector<1x8xf32>
    %13 = math.log %12 : vector<1x8xf32>
    %14 = vector.broadcast %13 : vector<1x8xf32> to vector<4x8xf32>
    %15 = arith.subf %9, %14 : vector<4x8xf32>
    %16 = vector.broadcast %12 : vector<1x8xf32> to vector<4x8xf32>
    %17 = arith.divf %10, %16 : vector<4x8xf32>
    %18 = tpu.concatenate %15, %17 in 0 : vector<4x8xf32>, vector<4x8xf32> -> vector<8x8xf32>
    %c0_7 = arith.constant 0 : index
    %c0_8 = arith.constant 0 : index
    %19 = vector.load %arg4[%c0_7, %c0_8] : memref<8x8xf32, #tpu.memory_space<vmem>>, vector<8x8xf32>
    tpu.vector_store %arg4[%c0_7, %c0_8], %18 {strides = array<i32>} : memref<8x8xf32, #tpu.memory_space<vmem>>, vector<8x8xf32>,
    return
  }
  func.func @transform_0(%arg0: i32) -> (i32, i32) {
    %c0_i32 = arith.constant 0 : i32
    %c0_i32_0 = arith.constant 0 : i32
    %c0_i32_1 = arith.constant 0 : i32
    return %c0_i32, %c0_i32_0 : i32, i32
  }
  func.func @transform_1(%arg0: i32) -> (i32, i32) {
    %c0_i32 = arith.constant 0 : i32
    %c0_i32_0 = arith.constant 0 : i32
    %c0_i32_1 = arith.constant 0 : i32
    return %c0_i32, %c0_i32_0 : i32, i32
  }
  func.func @transform_2(%arg0: i32) -> (i32, i32) {
    %c0_i32 = arith.constant 0 : i32
    %c0_i32_0 = arith.constant 0 : i32
    return %arg0, %c0_i32 : i32, i32
  }
  func.func @transform_3(%arg0: i32) -> (i32, i32) {
    %c0_i32 = arith.constant 0 : i32
    %c0_i32_0 = arith.constant 0 : i32
    return %c0_i32, %arg0 : i32, i32
  }
}

</mosaic_0001>

<llo_original>
// kernel: tpu_custom_call.1
$region0: #{tpu_custom_call.1}
  #allocation0 [shape = 'u32[]', space=smem, size = 0x4, offset = 0x4, fixed_abs, tag = 'smem constant byte address 0x4 - core index']
  #allocation1 [shape = 'u32[144,128]{1,0:T(1,128)}', space=vmem, size = 0x12000, scoped, tag = 'internal scratch']
  %s0 = inlined_call_operand.hbm [shape: f32[4,32], index: 0, kind: input, shape index: {}]
  %s1 = inlined_call_operand.vmem [shape: f32[4,1], index: 1, kind: input, shape index: {}]
  %s2 = inlined_call_operand.vmem [shape: f32[8,32], index: 2, kind: input, shape index: {}]
  %s3 = inlined_call_operand.hbm [shape: f32[8,8], index: 3, kind: output, shape index: {}]
  %s4 = sld [smem:[#allocation0]]
  $region26: #{tpu_custom_call.1} parent=0
    _
  %s6 = ssub.s32 1, %s4
  %s7 = scalar_select 0, %s6, %s4
  $region1: #{tpu_custom_call.1} parent=0
    #allocation2 [shape = 'u8[2048]{0}', space=vmem, size = 0x800, scoped, tag = 'input window, operand 0, single buffered']
    #allocation3 [shape = 's32[1]{0}', space=sflag, size = 0x4, scoped, tag = 'scoped memory for tpu_custom_call.1']
    #allocation4 [shape = 's32[1]{0}', space=sflag, size = 0x4, scoped, tag = 'scoped memory for tpu_custom_call.1']
    #allocation5 [shape = 'u8[4096]{0}', space=vmem, size = 0x1000, scoped, tag = 'output window, operand 0, single buffered']
    %8 = vsyncpa [#allocation3], 0
    %9 = vsyncpa [#allocation4], 0
    // Predicated region
    $region2: #{tpu_custom_call.1} parent=1 // pred_check
      _
    $region3: #{tpu_custom_call.1} parent=1 // pred_check_branch
      %11 = sbr.rel (0) target = $region5
    $region4: #{tpu_custom_call.1} parent=1 // pred_region
      %s13 = ssub.s32 64, 64
      %14 = vsyncadd [#allocation3], %s13
      %s16 = sshll.u32 [#allocation2], 4
      %s17 = int_to_ptr.vmem [resolvable:$true] %s16
      %19 = dma.hbm_to_vmem [thread:$0]  %s0, 64, %s17, [#allocation3]
    $region5: #{tpu_custom_call.1} parent=1 // pred_fallthru
      _
    // Predicated region
    $region6: #{tpu_custom_call.1} parent=1 // pred_check
      _
    $region7: #{tpu_custom_call.1} parent=1 // pred_check_branch
      %21 = sbr.rel (0) target = $region9
    $region8: #{tpu_custom_call.1} parent=1 // pred_region
      _
    $region9: #{tpu_custom_call.1} parent=1 // pred_fallthru
      _
    // Predicated region
    $region10: #{tpu_custom_call.1} parent=1 // pred_check
      _
    $region11: #{tpu_custom_call.1} parent=1 // pred_check_branch
      %23 = sbr.rel (0) target = $region13
    $region12: #{tpu_custom_call.1} parent=1 // pred_region
      _
    $region13: #{tpu_custom_call.1} parent=1 // pred_fallthru
      _
    // Predicated region
    $region14: #{tpu_custom_call.1} parent=1 // pred_check
      _
    $region15: #{tpu_custom_call.1} parent=1 // pred_check_branch
      %25 = sbr.rel (0) target = $region17
    $region16: #{tpu_custom_call.1} parent=1 // pred_region
      %26 = dma.done [#allocation3], 64
    $region17: #{tpu_custom_call.1} parent=1 // pred_fallthru
      _
    %v27 = vld [vmem:[#allocation2] sm:$0xf]
    %v28 = vld [vmem:[%s2] sm:$0xff]
    %v29 = vld [vmem:[%s1] sm:$0xf]
    %31 = vset.pattern.permute.xlu0 0
    %32 = vperm.xlu0 %31, %v29
    %v33 = vpop.permute.xlu0 %32
    %vm35 = vcmask 261120
    %v37 = vsel %vm35, %v27, 0
    %v40 = vsel %vm35, %v28, 0
    %42 = vmatprep.subr.mxu0 0.0
    %43 = vmatpush1.xpose.msra.mxu0 0.0
    %44 = vmatprep.subr.mxu0 0.0
    %45 = vmatpush1.xpose.msra.mxu0 0.0
    %46 = vmatprep.subr.mxu0 0.0
    %47 = vmatpush1.xpose.msra.mxu0 0.0
    %48 = vmatprep.subr.mxu0 0.0
    %49 = vmatpush1.xpose.msra.mxu0 0.0
    %50 = vmatprep.subr.mxu0 0.0
    %51 = vmatpush1.xpose.msra.mxu0 0.0
    %52 = vmatprep.subr.mxu0 0.0
    %53 = vmatpush1.xpose.msra.mxu0 0.0
    %54 = vmatprep.subr.mxu0 0.0
    %55 = vmatpush1.xpose.msra.mxu0 0.0
    %56 = vmatprep.subr.mxu0 0.0
    %57 = vmatpush1.xpose.msra.mxu0 0.0
    %58 = vmatprep.subr.mxu0 0.0
    %59 = vmatpush1.xpose.msra.mxu0 0.0
    %60 = vmatprep.subr.mxu0 0.0
    %61 = vmatpush1.xpose.msra.mxu0 0.0
    %62 = vmatprep.subr.mxu0 0.0
    %63 = vmatpush1.xpose.msra.mxu0 0.0
    %64 = vmatprep.subr.mxu0 0.0
    %65 = vmatpush1.xpose.msra.mxu0 0.0
    %66 = vmatprep.subr.mxu0 0.0
    %67 = vmatpush1.xpose.msra.mxu0 0.0
    %68 = vmatprep.subr.mxu0 0.0
    %69 = vmatpush1.xpose.msra.mxu0 0.0
    %70 = vmatprep.subr.mxu0 0.0
    %71 = vmatpush1.xpose.msra.mxu0 0.0
    %72 = vmatprep.subr.mxu0 0.0
    %73 = vmatpush1.xpose.msra.mxu0 %v40
    %74 = vmatprep.subr.mxu0 0.0
    %75 = vmatpush2.xpose.msra.mxu0 0.0
    %76 = vmatprep.subr.mxu0 0.0
    %77 = vmatpush2.xpose.msra.mxu0 0.0
    %78 = vmatprep.subr.mxu0 0.0
    %79 = vmatpush2.xpose.msra.mxu0 0.0
    %80 = vmatprep.subr.mxu0 0.0
    %81 = vmatpush2.xpose.msra.mxu0 0.0
    %82 = vmatprep.subr.mxu0 0.0
    %83 = vmatpush2.xpose.msra.mxu0 0.0
    %84 = vmatprep.subr.mxu0 0.0
    %85 = vmatpush2.xpose.msra.mxu0 0.0
    %86 = vmatprep.subr.mxu0 0.0
    %87 = vmatpush2.xpose.msra.mxu0 0.0
    %88 = vmatprep.subr.mxu0 0.0
    %89 = vmatpush2.xpose.msra.mxu0 0.0
    %90 = vmatprep.subr.mxu0 0.0
    %91 = vmatpush2.xpose.msra.mxu0 0.0
    %92 = vmatprep.subr.mxu0 0.0
    %93 = vmatpush2.xpose.msra.mxu0 0.0
    %94 = vmatprep.subr.mxu0 0.0
    %95 = vmatpush2.xpose.msra.mxu0 0.0
    %96 = vmatprep.subr.mxu0 0.0
    %97 = vmatpush2.xpose.msra.mxu0 0.0
    %98 = vmatprep.subr.mxu0 0.0
    %99 = vmatpush2.xpose.msra.mxu0 0.0
    %100 = vmatprep.subr.mxu0 0.0
    %101 = vmatpush2.xpose.msra.mxu0 0.0
    %102 = vmatprep.subr.mxu0 0.0
    %103 = vmatpush2.xpose.msra.mxu0 0.0
    %104 = vmatprep.subr.mxu0 0.0
    %105 = vmatpush2.xpose.msra.mxu0 0.0
    %106 = vmatprep.mubr.f32.mxu0 0.0
    %107 = vmatmul.mubr.f32.gmra.mxu0 %v37
    %v108 = vpop.f32.mrf.mxu0
    %v109 = vadd.f32 %v33, %v108
    %v110 = vpop.f32.mrf.mxu0
    %111 = vdwg.mxu0
    %vm112 = vcmask 60416
    %v113 = vsel %vm112, %v109, -inf
    %v114 = vrot.slane %v113, 4
    %v115 = vmax.f32 %v113, %v114
    %v116 = vrot.slane %v115, 2
    %v117 = vmax.f32 %v115, %v116
    %v118 = vrot.slane %v117, 1
    %v119 = vmax.f32 %v117, %v118
    %v120 = vsub.f32 %v109, %v119
    %v121 = vmul.f32 %v120, 1.442695
    %v122 = vpow.pop %v121
    %v123 = vsel %vm112, %v122, 0.0
    %v124 = vrot.slane %v123, 4
    %v125 = vadd.f32 %v123, %v124
    %v126 = vrot.slane %v125, 2
    %v127 = vadd.f32 %v125, %v126
    %v128 = vrot.slane %v127, 1
    %v129 = vadd.f32 %v127, %v128
    %v130 = vlog2.pop %v129
    %v131 = vmul.f32 %v130, 0.6931472
    %v132 = vsub.f32 %v120, %v131
    %v133 = vrcp.pop %v129
    %v134 = vmul.f32 %v122, %v133
    %v136 = vrot.slane %v134, 4
    %vm138 = vcmask 1043456
    %v139 = vsel %vm138, %v132, %v136
    %vm140 = vcmask 64512
    %141 = vst.msk [vmem:[#allocation5] sm:$0xff] %vm140, %v139
    // Predicated region
    $region18: #{tpu_custom_call.1} parent=1 // pred_check
      _
    $region19: #{tpu_custom_call.1} parent=1 // pred_check_branch
      %143 = sbr.rel (0) target = $region21
    $region20: #{tpu_custom_call.1} parent=1 // pred_region
      %s145 = ssub.s32 128, 128
      %146 = vsyncadd [#allocation4], %s145
      %s148 = sshll.u32 [#allocation5], 4
      %s149 = int_to_ptr.vmem [resolvable:$true] %s148
      %151 = dma.vmem_to_hbm [thread:$0]  %s149, 128, %s3, [#allocation4]
    $region21: #{tpu_custom_call.1} parent=1 // pred_fallthru
      _
    // Predicated region
    $region22: #{tpu_custom_call.1} parent=1 // pred_check
      _
    $region23: #{tpu_custom_call.1} parent=1 // pred_check_branch
      %153 = sbr.rel (0) target = $region25
    $region24: #{tpu_custom_call.1} parent=1 // pred_region
      %154 = dma.done [#allocation4], 128
    $region25: #{tpu_custom_call.1} parent=1 // pred_fallthru
      _
    %155 = vsyncpa [#allocation3], 1
    %156 = vsyncpa [#allocation4], 1

</llo_original>
